<compile_context>
chip_gen: v6e
topology: v6e:2x2x1
jax: 0.10.0
libtpu: 0.0.40
codegen_flags: <defaults>
</compile_context>

<pallas_src>
import jax
import jax.numpy as jnp
from jax import lax
from jax.experimental import pallas as pl
from jax.experimental.pallas import tpu as pltpu

MAX_TOKENS_PER_BLOCK = 512  # output tile height cap (multiple of 8)
DMA_WINDOW = 32             # max in-flight row-gather DMAs per token block


def _round_up(x, m):
    return ((x + m - 1) // m) * m


def _gather_kernel(ids_ref, table_hbm, out_ref, rows_vmem, sem):
    """Gather one tile of embedding rows from the HBM table.

    ids_ref   : SMEM (padded_tokens,) int32 token ids (scalar-prefetched)
    table_hbm : HBM  (n_token, d_model) embedding table (memory_space=pl.ANY)
    out_ref   : VMEM (TPB, d_model) output tile
    rows_vmem : VMEM (TPB, d_model) gather landing buffer
    sem       : DMA semaphores (window,)
    """
    tpb = out_ref.shape[0]
    base = pl.program_id(0) * tpb
    window = min(DMA_WINDOW, tpb)

    def row_copy(t, slot):
        row = ids_ref[base + t]
        return pltpu.make_async_copy(
            table_hbm.at[pl.ds(row, 1), :],
            rows_vmem.at[pl.ds(t, 1), :],
            sem.at[slot],
        )

    # Issue one row DMA per token, keeping at most `window` copies in flight.
    @pl.loop(0, tpb)
    def _(t):
        slot = t % window

        @pl.when(t >= window)
        def _():
            row_copy(t - window, slot).wait()  # retire the copy that used this slot

        row_copy(t, slot).start()

    # Drain the last `window` outstanding copies.
    @pl.loop(tpb - window, tpb)
    def _(t):
        row_copy(t, t % window).wait()

    # Full-tile, lane-dense store of the gathered rows.
    out_ref[...] = rows_vmem[...]


def embedding_lookup(ids_flat, table, tokens_per_block=None):
    """ids_flat: (num_tokens,) int ids; table: (n_token, d_model) -> (num_tokens, d_model)."""
    num_tokens = ids_flat.shape[0]
    n_token, d_model = table.shape

    if tokens_per_block is None:
        tokens_per_block = min(MAX_TOKENS_PER_BLOCK, _round_up(max(num_tokens, 1), 8))
    tpb = tokens_per_block
    window = min(DMA_WINDOW, tpb)

    num_blocks = pl.cdiv(num_tokens, tpb)
    padded = num_blocks * tpb

    ids = ids_flat.astype(jnp.int32)
    # Clamp so out-of-range ids never issue out-of-bounds HBM DMAs.
    # (PyTorch nn.Embedding raises IndexError in that case.)
    ids = jnp.clip(ids, 0, n_token - 1)
    if padded != num_tokens:
        # Padded tail ids (zeros) gather a real row that is sliced off below.
        ids = jnp.pad(ids, (0, padded - num_tokens))

    out_block_bytes = tpb * d_model * table.dtype.itemsize
    vmem_needed = 3 * out_block_bytes + (1 << 20)  # 2x pipelined out + gather scratch + slack
    compiler_params = pltpu.CompilerParams(
        dimension_semantics=("parallel",),
        vmem_limit_bytes=int(min(max(vmem_needed, 16 << 20), 64 << 20)),
    )

    out = pl.pallas_call(
        _gather_kernel,
        out_shape=jax.ShapeDtypeStruct((padded, d_model), table.dtype),
        grid_spec=pltpu.PrefetchScalarGridSpec(
            num_scalar_prefetch=1,               # ids -> SMEM
            grid=(num_blocks,),
            in_specs=[pl.BlockSpec(memory_space=pl.ANY)],   # table stays in HBM
            out_specs=pl.BlockSpec((tpb, d_model), lambda i, ids: (i, 0)),
            scratch_shapes=[
                pltpu.VMEM((tpb, d_model), table.dtype),
                pltpu.SemaphoreType.DMA((window,)),
            ],
        ),
        compiler_params=compiler_params,
    )(ids, table)

    return out[:num_tokens]


class EmbeddingPallas:
    """JAX/Pallas equivalent of the PyTorch `Embedding` module's forward pass."""

    def __init__(self, n_token, d_model, key, embed_vector=None, requires_train=True):
        self.n_token = n_token
        self.d_model = d_model
        self.requires_train = requires_train  # affects gradients only, not forward
        if embed_vector is not None:
            self.weight = jnp.asarray(embed_vector, dtype=jnp.float32)
        else:
            # Stand-in for nn.Embedding's default init / embed_path load.
            self.weight = jax.random.normal(key, (n_token, d_model), dtype=jnp.float32)

    def __call__(self, src):
        # src: integer ids of arbitrary shape, e.g. (B, S).
        flat = src.reshape(-1)
        emb = embedding_lookup(flat, self.weight)
        return emb.reshape(*src.shape, self.d_model)


if __name__ == "__main__":
    key = jax.random.PRNGKey(0)
    k_w, k_ids = jax.random.split(key)

    n_token, d_model = 64, 128
    batch, seq = 2, 8

    module = EmbeddingPallas(n_token, d_model, k_w)
    src = jax.random.randint(
        k_ids, (batch, seq), minval=0, maxval=n_token, dtype=jnp.int32
    )

    out = module(src)
    out = jax.block_until_ready(out)

    # Reference check against plain JAX gather (DMA gather is an exact row copy).
    ref = jnp.take(module.weight, src, axis=0)
    assert out.shape == (batch, seq, d_model), out.shape
    assert bool(jnp.array_equal(out, ref)), "mismatch vs reference gather"

    print("KERNEL_OK")
</pallas_src>

<mosaic_0001>
module attributes {stable_mosaic.version = 11 : i64} {
  func.func @_gather_kernel(%arg0: i32, %arg1: memref<16xi32, #tpu.memory_space<smem>>, %arg2: memref<64x128xf32, #tpu.memory_space<any>>, %arg3: memref<16x128xf32, #tpu.memory_space<vmem>>, %arg4: memref<16x128xf32, #tpu.memory_space<vmem>>, %arg5: memref<16x!tpu.dma_semaphore, #tpu.memory_space<semaphore_mem>>) attributes {dimension_semantics = [#tpu.dimension_semantics<parallel>], iteration_bounds = array<i64: 1>, scalar_prefetch = 1 : i64, scratch_operands = 2 : i64, tpu.core_type = #tpu.core_type<tc>, window_params = [{}, {transform_indices = @transform_1, window_bounds = array<i64: 16, 128>}]} {
    %c16_i32 = arith.constant 16 : i32
    %0 = arith.muli %arg0, %c16_i32 : i32
    %c0_i32 = arith.constant 0 : i32
    %c16_i32_0 = arith.constant 16 : i32
    %1 = arith.addi %c0_i32, %c16_i32_0 : i32
    %c1_i32 = arith.constant 1 : i32
    scf.for %arg6 = %c0_i32 to %1 step %c1_i32  : i32 {
      %c1_i32_9 = arith.constant 1 : i32
      %5 = arith.muli %arg6, %c1_i32_9 : i32
      %c0_i32_10 = arith.constant 0 : i32
      %6 = arith.addi %c0_i32_10, %5 : i32
      %c16_i32_11 = arith.constant 16 : i32
      %c0_i32_12 = arith.constant 0 : i32
      %7 = arith.cmpi eq, %c16_i32_11, %c0_i32_12 : i32
      %c1_i32_13 = arith.constant 1 : i32
      %8 = arith.select %7, %c1_i32_13, %c16_i32_11 : i32
      %9 = arith.remsi %6, %8 : i32
      %c0_i32_14 = arith.constant 0 : i32
      %10 = arith.cmpi ne, %9, %c0_i32_14 : i32
      %c0_i32_15 = arith.constant 0 : i32
      %11 = arith.cmpi slt, %9, %c0_i32_15 : i32
      %c0_i32_16 = arith.constant 0 : i32
      %12 = arith.cmpi slt, %8, %c0_i32_16 : i32
      %13 = arith.xori %11, %12 : i1
      %14 = arith.andi %13, %10 : i1
      %15 = arith.addi %9, %8 : i32
      %16 = arith.select %14, %15, %9 : i32
      %c16_i32_17 = arith.constant 16 : i32
      %17 = arith.cmpi sge, %6, %c16_i32_17 : i32
      %18 = arith.extui %17 : i1 to i32
      %c0_i32_18 = arith.constant 0 : i32
      %19 = arith.cmpi ne, %18, %c0_i32_18 : i32
      scf.if %19 {
        %c16_i32_21 = arith.constant 16 : i32
        %27 = arith.subi %6, %c16_i32_21 : i32
        %28 = arith.addi %0, %27 : i32
        %29 = arith.index_cast %28 : i32 to index
        %30 = memref.load %arg1[%29] : memref<16xi32, #tpu.memory_space<smem>>
        %c0_i32_22 = arith.constant 0 : i32
        %31 = tpu.memref_slice %arg2[%30, %c0_i32_22] : memref<64x128xf32, #tpu.memory_space<any>> -> memref<1x128xf32, #tpu.memory_space<any>>
        %c0_i32_23 = arith.constant 0 : i32
        %32 = tpu.memref_slice %arg4[%27, %c0_i32_23] : memref<16x128xf32, #tpu.memory_space<vmem>> -> memref<1x128xf32, #tpu.memory_space<vmem>>
        %33 = tpu.memref_slice %arg5[%16] : memref<16x!tpu.dma_semaphore, #tpu.memory_space<semaphore_mem>> -> memref<1x!tpu.dma_semaphore, #tpu.memory_space<semaphore_mem>>
        %34 = tpu.memref_squeeze %33 : memref<1x!tpu.dma_semaphore, #tpu.memory_space<semaphore_mem>> -> memref<!tpu.dma_semaphore, #tpu.memory_space<semaphore_mem>>
        tpu.wait_dma2 semaphore(%34 : memref<!tpu.dma_semaphore, #tpu.memory_space<semaphore_mem>>) src(%31 : memref<1x128xf32, #tpu.memory_space<any>>) dst(%32 : memref<1x128xf32, #tpu.memory_space<vmem>>)
      } else {
      }
      %20 = arith.addi %0, %6 : i32
      %21 = arith.index_cast %20 : i32 to index
      %22 = memref.load %arg1[%21] : memref<16xi32, #tpu.memory_space<smem>>
      %c0_i32_19 = arith.constant 0 : i32
      %23 = tpu.memref_slice %arg2[%22, %c0_i32_19] : memref<64x128xf32, #tpu.memory_space<any>> -> memref<1x128xf32, #tpu.memory_space<any>>
      %c0_i32_20 = arith.constant 0 : i32
      %24 = tpu.memref_slice %arg4[%6, %c0_i32_20] : memref<16x128xf32, #tpu.memory_space<vmem>> -> memref<1x128xf32, #tpu.memory_space<vmem>>
      %25 = tpu.memref_slice %arg5[%16] : memref<16x!tpu.dma_semaphore, #tpu.memory_space<semaphore_mem>> -> memref<1x!tpu.dma_semaphore, #tpu.memory_space<semaphore_mem>>
      %26 = tpu.memref_squeeze %25 : memref<1x!tpu.dma_semaphore, #tpu.memory_space<semaphore_mem>> -> memref<!tpu.dma_semaphore, #tpu.memory_space<semaphore_mem>>
      tpu.enqueue_dma source(%23 : memref<1x128xf32, #tpu.memory_space<any>>) target(%24 : memref<1x128xf32, #tpu.memory_space<vmem>>) target_semaphore(%26 : memref<!tpu.dma_semaphore, #tpu.memory_space<semaphore_mem>>)
    }
    %c16_i32_1 = arith.constant 16 : i32
    %c0_i32_2 = arith.constant 0 : i32
    %c16_i32_3 = arith.constant 16 : i32
    %2 = arith.addi %c0_i32_2, %c16_i32_3 : i32
    %c1_i32_4 = arith.constant 1 : i32
    scf.for %arg6 = %c0_i32_2 to %2 step %c1_i32_4  : i32 {
      %c1_i32_9 = arith.constant 1 : i32
      %5 = arith.muli %arg6, %c1_i32_9 : i32
      %c0_i32_10 = arith.constant 0 : i32
      %6 = arith.addi %c0_i32_10, %5 : i32
      %c16_i32_11 = arith.constant 16 : i32
      %c0_i32_12 = arith.constant 0 : i32
      %7 = arith.cmpi eq, %c16_i32_11, %c0_i32_12 : i32
      %c1_i32_13 = arith.constant 1 : i32
      %8 = arith.select %7, %c1_i32_13, %c16_i32_11 : i32
      %9 = arith.remsi %6, %8 : i32
      %c0_i32_14 = arith.constant 0 : i32
      %10 = arith.cmpi ne, %9, %c0_i32_14 : i32
      %c0_i32_15 = arith.constant 0 : i32
      %11 = arith.cmpi slt, %9, %c0_i32_15 : i32
      %c0_i32_16 = arith.constant 0 : i32
      %12 = arith.cmpi slt, %8, %c0_i32_16 : i32
      %13 = arith.xori %11, %12 : i1
      %14 = arith.andi %13, %10 : i1
      %15 = arith.addi %9, %8 : i32
      %16 = arith.select %14, %15, %9 : i32
      %17 = arith.addi %0, %6 : i32
      %18 = arith.index_cast %17 : i32 to index
      %19 = memref.load %arg1[%18] : memref<16xi32, #tpu.memory_space<smem>>
      %c0_i32_17 = arith.constant 0 : i32
      %20 = tpu.memref_slice %arg2[%19, %c0_i32_17] : memref<64x128xf32, #tpu.memory_space<any>> -> memref<1x128xf32, #tpu.memory_space<any>>
      %c0_i32_18 = arith.constant 0 : i32
      %21 = tpu.memref_slice %arg4[%6, %c0_i32_18] : memref<16x128xf32, #tpu.memory_space<vmem>> -> memref<1x128xf32, #tpu.memory_space<vmem>>
      %22 = tpu.memref_slice %arg5[%16] : memref<16x!tpu.dma_semaphore, #tpu.memory_space<semaphore_mem>> -> memref<1x!tpu.dma_semaphore, #tpu.memory_space<semaphore_mem>>
      %23 = tpu.memref_squeeze %22 : memref<1x!tpu.dma_semaphore, #tpu.memory_space<semaphore_mem>> -> memref<!tpu.dma_semaphore, #tpu.memory_space<semaphore_mem>>
      tpu.wait_dma2 semaphore(%23 : memref<!tpu.dma_semaphore, #tpu.memory_space<semaphore_mem>>) src(%20 : memref<1x128xf32, #tpu.memory_space<any>>) dst(%21 : memref<1x128xf32, #tpu.memory_space<vmem>>)
    }
    %c16_i32_5 = arith.constant 16 : i32
    %c0 = arith.constant 0 : index
    %c0_6 = arith.constant 0 : index
    %3 = vector.load %arg4[%c0, %c0_6] : memref<16x128xf32, #tpu.memory_space<vmem>>, vector<16x128xf32>
    %c0_7 = arith.constant 0 : index
    %c0_8 = arith.constant 0 : index
    %4 = vector.load %arg3[%c0_7, %c0_8] : memref<16x128xf32, #tpu.memory_space<vmem>>, vector<16x128xf32>
    tpu.vector_store %arg3[%c0_7, %c0_8], %3 {strides = array<i32>} : memref<16x128xf32, #tpu.memory_space<vmem>>, vector<16x128xf32>,
    return
  }
  func.func @transform_1(%arg0: i32, %arg1: memref<16xi32, #tpu.memory_space<smem>>) -> (i32, i32) {
    %c0_i32 = arith.constant 0 : i32
    %c0_i32_0 = arith.constant 0 : i32
    return %arg0, %c0_i32 : i32, i32
  }
}

</mosaic_0001>

<llo_original>
// kernel: tpu_custom_call.1
$region0: #{tpu_custom_call.1}
  #allocation0 [shape = 'u32[]', space=smem, size = 0x4, offset = 0x4, fixed_abs, tag = 'smem constant byte address 0x4 - core index']
  #allocation1 [shape = 'u32[144,128]{1,0:T(1,128)}', space=vmem, size = 0x12000, scoped, tag = 'internal scratch']
  #allocation2 [shape = 'f32[16,128]{1,0:T(8,128)}', space=vmem, size = 0x2000, scoped, tag = 'scratch operand']
  #allocation3 [shape = 's32[16]{0}', space=sflag, size = 0x40, scoped, tag = 'scratch operand']
  #allocation4 [shape = 's32[1]{0}', space=sflag, size = 0x4, scoped, tag = 'scoped memory for tpu_custom_call.1']
  #allocation5 [shape = 'u8[512]{0}', space=smem, size = 0x200, scoped, tag = 'prefetched SMEM operand 0']
  #allocation8 [shape = 's32[]', space=sflag, size = 0x4, offset = 0, fixed_abs, tag = 'sflag constant byte address 0x0 - dummy sync flag']
  #allocation9 [shape = 's32[]', space=sflag, size = 0x4, offset = 0, fixed_abs, tag = 'sflag constant byte address 0x0 - dummy sync flag']
  #allocation10 [shape = 'u32[]', space=smem, size = 0x4, offset = 0x44, fixed_abs, tag = 'smem constant byte address 0x44 - assertion arg 0']
  #allocation11 [shape = 'u32[]', space=smem, size = 0x4, offset = 0x48, fixed_abs, tag = 'smem constant byte address 0x48 - assertion arg 1']
  %s0 = inlined_call_operand.hbm [shape: s32[16], index: 0, kind: input, shape index: {}]
  %s1 = inlined_call_operand.hbm [shape: f32[64,128], index: 1, kind: input, shape index: {}]
  %s2 = inlined_call_operand.hbm [shape: f32[16,128], index: 2, kind: output, shape index: {}]
  %s3 = sld [smem:[#allocation0]]
  $region32: #{tpu_custom_call.1} parent=0
    _
  %s5 = ssub.s32 1, %s3
  %s6 = scalar_select 0, %s5, %s3
  %8 = dma.hbm_to_smem %s0, 16, [#allocation5], [#allocation4]
  %9 = dma.done [#allocation4], 16
  %10 = sfence
  $region1: #{tpu_custom_call.1} parent=0
    #allocation6 [shape = 'u8[8192]{0}', space=vmem, size = 0x2000, scoped, tag = 'output window, operand 0, single buffered']
    #allocation7 [shape = 's32[1]{0}', space=sflag, size = 0x4, scoped, tag = 'scoped memory for tpu_custom_call.1']
    %11 = vsyncpa [#allocation7], 0
    %s12 = smul.u32 0, 16
    loop: start=0, step=1, limit=16
    $region2: #{tpu_custom_call.1} parent=1 // loop_pre_header
      _
    $region3: #{tpu_custom_call.1} parent=1 // loop_header
      %s14 = sphi 0, %s18
      %p15 = scmp.ge.s32.totalorder %s14, 16
    $region4: #{tpu_custom_call.1} parent=1 // loop_header_branch
      %17 = sbr.rel (%p15) target = $region8
    $region5: #{tpu_custom_call.1} parent=1 // loop_body
      %p19 = scmp.lt.s32.totalorder %s14, 0
      %s20 = ssub.s32 0, %s14
      %s21 = scalar_select %p19, %s20, %s14
      %s22 = sand.u32 %s21, 15
      %s23 = ssub.s32 0, %s22
      %s24 = scalar_select %p19, %s23, %s22
      %p25 = scmp.ne.s32.totalorder %s24, 0
      %p26 = scmp.lt.s32.totalorder %s24, 0
      %p27 = pnand %p26, %p25
      %p28 = pneg %p27
      %s29 = sadd.s32 %s24, 16
      %s30 = scalar_select %p28, %s29, %s24
      %p31 = scmp.ge.s32.totalorder %s14, 16
      // Predicated region
      $region9: #{tpu_custom_call.1} parent=5 // pred_check
        %p32 = pneg %p31
      $region10: #{tpu_custom_call.1} parent=5 // pred_check_branch
        %34 = sbr.rel (%p32) target = $region12
      $region11: #{tpu_custom_call.1} parent=5 // pred_region
        %s35 = ssub.s32 %s14, 16
        %s36 = sadd.s32 %s12, %s35
        %s37 = sld [smem:[#allocation5 + %s36]]
        %s38 = scalar_lea.sflag [#allocation3], %s30
        %s39 = smul.u32 1, 1
        %s40 = sshll.u32 %s39, 4
        %41 = dma.done %s38, %s40
      $region12: #{tpu_custom_call.1} parent=5 // pred_fallthru
        _
      %s42 = sadd.s32 %s12, %s14
      %s43 = sld [smem:[#allocation5 + %s42]]
      %s44 = smul.addr %s43, 16
      %s45 = scalar_lea.hbm %s1, %s44
      %s46 = scalar_lea.vmem [#allocation2], %s14
      %s47 = scalar_lea.sflag [#allocation3], %s30
      // Predicated region
      $region13: #{tpu_custom_call.1} parent=5 // pred_check
        _
      $region14: #{tpu_custom_call.1} parent=5 // pred_check_branch
        %49 = sbr.rel target = $region16
      $region15: #{tpu_custom_call.1} parent=5 // pred_region
        %50 = sst [smem:[#allocation10]] [#allocation9]
        %51 = sst [smem:[#allocation11]] [#allocation8]
      $region16: #{tpu_custom_call.1} parent=5 // pred_fallthru
        _
      %53 = shalt.err (0)
      %s55 = sshll.u32 %s46, 4
      %s56 = int_to_ptr.vmem [resolvable:$true] %s55
      %58 = dma.hbm_to_vmem [thread:$0]  %s45, 16, %s56, %s47
    $region6: #{tpu_custom_call.1} parent=1 // loop_footer
      %s18 = sadd.s32 1, %s14
    $region7: #{tpu_custom_call.1} parent=1 // loop_footer_branch
      %13 = sbr.rel target = $region3
    $region8: #{tpu_custom_call.1} parent=1 // loop_exit
      _
    loop: start=0, step=1, limit=16
    $region17: #{tpu_custom_call.1} parent=1 // loop_pre_header
      _
    $region18: #{tpu_custom_call.1} parent=1 // loop_header
      %s60 = sphi 0, %s64
      %p61 = scmp.ge.s32.totalorder %s60, 16
    $region19: #{tpu_custom_call.1} parent=1 // loop_header_branch
      %63 = sbr.rel (%p61) target = $region23
    $region20: #{tpu_custom_call.1} parent=1 // loop_body
      %p65 = scmp.lt.s32.totalorder %s60, 0
      %s66 = ssub.s32 0, %s60
      %s67 = scalar_select %p65, %s66, %s60
      %s68 = sand.u32 %s67, 15
      %s69 = ssub.s32 0, %s68
      %s70 = scalar_select %p65, %s69, %s68
      %p71 = scmp.ne.s32.totalorder %s70, 0
      %p72 = scmp.lt.s32.totalorder %s70, 0
      %p73 = pnand %p72, %p71
      %p74 = pneg %p73
      %s75 = sadd.s32 %s70, 16
      %s76 = scalar_select %p74, %s75, %s70
      %s77 = sadd.s32 %s12, %s60
      %s78 = sld [smem:[#allocation5 + %s77]]
      %s79 = scalar_lea.sflag [#allocation3], %s76
      %s80 = smul.u32 1, 1
      %s81 = sshll.u32 %s80, 4
      %82 = dma.done %s79, %s81
    $region21: #{tpu_custom_call.1} parent=1 // loop_footer
      %s64 = sadd.s32 1, %s60
    $region22: #{tpu_custom_call.1} parent=1 // loop_footer_branch
      %59 = sbr.rel target = $region18
    $region23: #{tpu_custom_call.1} parent=1 // loop_exit
      _
    %v83 = vld [vmem:[#allocation2] sm:$0xff]
    %v84 = vld [vmem:[#allocation2 + $0x8] sm:$0xff]
    %85 = vst [vmem:[#allocation6] sm:$0xff] %v83
    %86 = vst [vmem:[#allocation6 + $0x8] sm:$0xff] %v84
    // Predicated region
    $region24: #{tpu_custom_call.1} parent=1 // pred_check
      _
    $region25: #{tpu_custom_call.1} parent=1 // pred_check_branch
      %88 = sbr.rel (0) target = $region27
    $region26: #{tpu_custom_call.1} parent=1 // pred_region
      %s90 = ssub.s32 256, 256
      %91 = vsyncadd [#allocation7], %s90
      %s92 = sshll.u32 [#allocation6], 4
      %s93 = int_to_ptr.vmem [resolvable:$true] %s92
      %98 = dma.vmem_to_hbm [thread:$0]  %s93, 256, %s2, [#allocation7], 128, 128, 8
    $region27: #{tpu_custom_call.1} parent=1 // pred_fallthru
      _
    // Predicated region
    $region28: #{tpu_custom_call.1} parent=1 // pred_check
      _
    $region29: #{tpu_custom_call.1} parent=1 // pred_check_branch
      %100 = sbr.rel (0) target = $region31
    $region30: #{tpu_custom_call.1} parent=1 // pred_region
      %101 = dma.done [#allocation7], 256
    $region31: #{tpu_custom_call.1} parent=1 // pred_fallthru
      _
    %102 = vsyncpa [#allocation7], 1
  %103 = vsyncmov [#allocation3]
  %s104 = vpop.sfrf %103
  %p105 = scmp.eq.s32.totalorder %s104, 0
  %p106 = pneg %p105
  %108 = shalt.err (%p106)
  %s109 = scalar_lea.sflag [#allocation3], 1
  %110 = vsyncmov %s109
  %s111 = vpop.sfrf %110
  %p112 = scmp.eq.s32.totalorder %s111, 0
  %p113 = pneg %p112
  %115 = shalt.err (%p113)
  %s116 = scalar_lea.sflag [#allocation3], 2
  %117 = vsyncmov %s116
  %s118 = vpop.sfrf %117
  %p119 = scmp.eq.s32.totalorder %s118, 0
  %p120 = pneg %p119
  %122 = shalt.err (%p120)
  %s123 = scalar_lea.sflag [#allocation3], 3
  %124 = vsyncmov %s123
  %s125 = vpop.sfrf %124
  %p126 = scmp.eq.s32.totalorder %s125, 0
  %p127 = pneg %p126
  %129 = shalt.err (%p127)
  %s130 = scalar_lea.sflag [#allocation3], 4
  %131 = vsyncmov %s130
  %s132 = vpop.sfrf %131
  %p133 = scmp.eq.s32.totalorder %s132, 0
  %p134 = pneg %p133
  %136 = shalt.err (%p134)
  %s137 = scalar_lea.sflag [#allocation3], 5
  %138 = vsyncmov %s137
  %s139 = vpop.sfrf %138
  %p140 = scmp.eq.s32.totalorder %s139, 0
  %p141 = pneg %p140
  %143 = shalt.err (%p141)
  %s144 = scalar_lea.sflag [#allocation3], 6
  %145 = vsyncmov %s144
  %s146 = vpop.sfrf %145
  %p147 = scmp.eq.s32.totalorder %s146, 0
  %p148 = pneg %p147
  %150 = shalt.err (%p148)
  %s151 = scalar_lea.sflag [#allocation3], 7
  %152 = vsyncmov %s151
  %s153 = vpop.sfrf %152
  %p154 = scmp.eq.s32.totalorder %s153, 0
  %p155 = pneg %p154
  %157 = shalt.err (%p155)
  %s158 = scalar_lea.sflag [#allocation3], 8
  %159 = vsyncmov %s158
  %s160 = vpop.sfrf %159
  %p161 = scmp.eq.s32.totalorder %s160, 0
  %p162 = pneg %p161
  %164 = shalt.err (%p162)
  %s165 = scalar_lea.sflag [#allocation3], 9
  %166 = vsyncmov %s165
  %s167 = vpop.sfrf %166
  %p168 = scmp.eq.s32.totalorder %s167, 0
  %p169 = pneg %p168
  %171 = shalt.err (%p169)
  %s172 = scalar_lea.sflag [#allocation3], 10
  %173 = vsyncmov %s172
  %s174 = vpop.sfrf %173
  %p175 = scmp.eq.s32.totalorder %s174, 0
  %p176 = pneg %p175
  %178 = shalt.err (%p176)
  %s179 = scalar_lea.sflag [#allocation3], 11
  %180 = vsyncmov %s179
  %s181 = vpop.sfrf %180
  %p182 = scmp.eq.s32.totalorder %s181, 0
  %p183 = pneg %p182
  %185 = shalt.err (%p183)
  %s186 = scalar_lea.sflag [#allocation3], 12
  %187 = vsyncmov %s186
  %s188 = vpop.sfrf %187
  %p189 = scmp.eq.s32.totalorder %s188, 0
  %p190 = pneg %p189
  %192 = shalt.err (%p190)
  %s193 = scalar_lea.sflag [#allocation3], 13
  %194 = vsyncmov %s193
  %s195 = vpop.sfrf %194
  %p196 = scmp.eq.s32.totalorder %s195, 0
  %p197 = pneg %p196
  %199 = shalt.err (%p197)
  %s200 = scalar_lea.sflag [#allocation3], 14
  %201 = vsyncmov %s200
  %s202 = vpop.sfrf %201
  %p203 = scmp.eq.s32.totalorder %s202, 0
  %p204 = pneg %p203
  %206 = shalt.err (%p204)
  %s207 = scalar_lea.sflag [#allocation3], 15
  %208 = vsyncmov %s207
  %s209 = vpop.sfrf %208
  %p210 = scmp.eq.s32.totalorder %s209, 0
  %p211 = pneg %p210
  %213 = shalt.err (%p211)

</llo_original>
